<compile_context>
chip_gen: v7x
topology: tpu7x:2x2x1
jax: 0.10.0
libtpu: 0.0.40
codegen_flags: <defaults>
</compile_context>

<pallas_src>
import jax
import jax.numpy as jnp
from jax import lax
from jax.experimental import pallas as pl
from jax.experimental.pallas import tpu as pltpu

# ---- model configuration (small but consistent with the module) -------------
ID_DIMS, EXP_DIMS, TEX_DIMS = 80, 64, 80
FC_DIM = ID_DIMS + EXP_DIMS + TEX_DIMS + 3 + 27 + 2 + 1        # 257
FC_PAD = ((FC_DIM + 127) // 128) * 128                         # 384: lane-dense output
C_FEAT = 64                                                    # backbone_last_dim (real: 2048)
C_IN_PAD = 8                                                   # stem contraction padded to a sublane multiple


# ---- fused Pallas kernel -----------------------------------------------------
def _fused_kernel(x_ref, ws_ref, wh_ref, bh_ref, o_ref, xpad_ref, feat_ref):
    # x_ref   : [B, C_IN, HW]      raw f32 batch (free reshape of NCHW), HW lane-dense
    # ws_ref  : [C_FEAT, C_IN_PAD] stem conv1x1 weight (bf16); col C_IN = b_stem, rest of pad = 0
    # wh_ref  : [C_FEAT, FC_PAD]   fused 7-head conv1x1 weight, zero-padded 257->384 (bf16)
    # bh_ref  : [1, FC_PAD]        fused head bias, zero-padded (f32)
    # o_ref   : [B, FC_PAD]        batched output (f32), single dense store
    # xpad_ref: [C_IN_PAD, HW]     f32 staging scratch (in-kernel channel pad + bias channel)
    # feat_ref: [B, C_FEAT]        pooled backbone features (f32)
    B, c_in, hw = x_ref.shape

    # Constant part of the padded stem input: channel c_in is the all-ones bias channel
    # (w_stem_aug column c_in holds b_stem), remaining pad channels are zero.
    ch = lax.broadcasted_iota(jnp.int32, (C_IN_PAD, hw), 0)
    xpad_ref[...] = jnp.where(ch == c_in, 1.0, 0.0).astype(xpad_ref.dtype)

    # Pooling vector with 1/HW folded in (constant, hoisted out of the loop).
    inv_hw = jnp.full((1, hw), 1.0 / hw, jnp.float32)

    for b in range(B):                                    # B is tiny & static -> unrolled
        xpad_ref[0:c_in, :] = x_ref[b]                    # raw f32 rows; pad rows persist
        x8 = xpad_ref[...].astype(jnp.bfloat16)           # in-kernel cast (idle VPU)

        # stem conv1x1 (+bias via the ones channel) -> ReLU   [C_FEAT, HW], f32 accumulate
        y = jnp.dot(ws_ref[...], x8, preferred_element_type=jnp.float32)
        y = jnp.maximum(y, 0.0)

        # global average pool on the MXU -> lane-dense row [1, C_FEAT] for the head matmul.
        row = lax.dot_general(inv_hw, y, (((1,), (1,)), ((), ())),
                              preferred_element_type=jnp.float32)
        feat_ref[b:b + 1, :] = row

    # ONE batched head matmul (fused 7 conv1x1 heads) + bias, then the selective ReLU
    # on the exp_dims slice only (conv1x1_relu branch), and ONE dense [B, FC_PAD] store.
    out = jnp.dot(feat_ref[...].astype(wh_ref.dtype), wh_ref[...],
                  preferred_element_type=jnp.float32) + bh_ref[...]
    col = lax.broadcasted_iota(jnp.int32, (1, FC_PAD), 1)
    relu_cols = (col >= ID_DIMS) & (col < ID_DIMS + EXP_DIMS)
    o_ref[...] = jnp.where(relu_cols, jnp.maximum(out, 0.0), out)


# ---- wrapper -----------------------------------------------------------------
def recon_net_forward(x_nchw, params, rgb_light=True):
    B, C_in, H, W = x_nchw.shape
    HW = H * W

    # NCHW -> [B, C_in, HW] is a free reshape; NO pad/cast HBM pass before the kernel.
    x = x_nchw.reshape(B, C_in, HW)

    out = pl.pallas_call(
        _fused_kernel,
        out_shape=jax.ShapeDtypeStruct((B, FC_PAD), jnp.float32),
        # single invocation (no grid): everything (tiny) resident in VMEM once
        in_specs=[
            pl.BlockSpec(memory_space=pltpu.MemorySpace.VMEM),
            pl.BlockSpec(memory_space=pltpu.MemorySpace.VMEM),
            pl.BlockSpec(memory_space=pltpu.MemorySpace.VMEM),
            pl.BlockSpec(memory_space=pltpu.MemorySpace.VMEM),
        ],
        out_specs=pl.BlockSpec(memory_space=pltpu.MemorySpace.VMEM),
        scratch_shapes=[
            pltpu.VMEM((C_IN_PAD, HW), jnp.float32),      # staged / padded stem input
            pltpu.VMEM((B, C_FEAT), jnp.float32),         # pooled features
        ],
    )(x, params["w_stem_aug"], params["w_head"], params["b_head"])

    out = out[:, :FC_DIM]

    if rgb_light:
        return out

    # rgb_light == False post-processing (pure glue on a tiny [B, 257] array)
    id_exp_tex_angle = out[:, :-30]                 # [B, 227]
    gamma = out[:, -30:-3].reshape(-1, 3, 9)        # [B, 3, 9]
    trans = out[:, -3:]                             # [B, 3]
    gamma_mean = jnp.mean(gamma, axis=1)            # [B, 9]
    x_new = jnp.concatenate([id_exp_tex_angle, gamma_mean, trans], axis=1)  # [B, 239]
    # torch clamps x_new[:, :532] AFTER the concat; width (239) < 532 -> clamp everything.
    n_clamp = min(532, x_new.shape[1])
    x_new = jnp.concatenate(
        [jnp.clip(x_new[:, :n_clamp], 0.0, 1.0), x_new[:, n_clamp:]], axis=1)
    return x_new


# ---- deterministic parameter construction ------------------------------------
def make_params(key, c_in):
    ks = jax.random.split(key, 4)
    w_stem = 0.05 * jax.random.normal(ks[0], (C_FEAT, c_in), jnp.float32)
    b_stem = 0.05 * jax.random.normal(ks[1], (C_FEAT, 1), jnp.float32)
    # bias folded into column c_in of the stem weight (matches the kernel's ones channel);
    # remaining pad columns are zero so K=8 stays exact.
    w_stem_aug = jnp.concatenate(
        [w_stem, b_stem, jnp.zeros((C_FEAT, C_IN_PAD - c_in - 1), jnp.float32)],
        axis=1).astype(jnp.bfloat16)

    # per-branch conv1x1 weights [C_FEAT, out_i], concatenated along the output dim
    branch_dims = [ID_DIMS, EXP_DIMS, TEX_DIMS, 3, 27, 2, 1]
    wk = jax.random.split(ks[2], len(branch_dims))
    bk = jax.random.split(ks[3], len(branch_dims))
    w_head = jnp.concatenate(
        [0.05 * jax.random.normal(wk[i], (C_FEAT, d), jnp.float32)
         for i, d in enumerate(branch_dims)], axis=1)
    b_head = jnp.concatenate(
        [0.05 * jax.random.normal(bk[i], (1, d), jnp.float32)
         for i, d in enumerate(branch_dims)], axis=1)
    # zero-pad the fused head to a lane-dense 384-wide output; the wrapper slices back to 257
    w_head = jnp.pad(w_head, ((0, 0), (0, FC_PAD - FC_DIM))).astype(jnp.bfloat16)
    b_head = jnp.pad(b_head, ((0, 0), (0, FC_PAD - FC_DIM)))
    return {"w_stem_aug": w_stem_aug, "w_head": w_head, "b_head": b_head}


# ---- pure-JAX reference (for correctness check) -------------------------------
def _reference(x_nchw, params):
    B, C_in, H, W = x_nchw.shape
    HW = H * W
    x = x_nchw.reshape(B, C_in, HW).astype(jnp.bfloat16)
    ws = params["w_stem_aug"][:, :C_in]                       # bf16 [C_FEAT, C_in]
    bs = params["w_stem_aug"][:, C_in:C_in + 1]               # bf16 [C_FEAT, 1] (folded bias)
    y = jnp.einsum("fc,bch->bfh", ws, x, preferred_element_type=jnp.float32)
    y = jnp.maximum(y + bs.astype(jnp.float32)[None], 0.0)    # stem + bias + ReLU
    feat = jnp.mean(y, axis=2)                                # [B, C_FEAT] f32 GAP
    out = jnp.dot(feat.astype(jnp.bfloat16), params["w_head"],
                  preferred_element_type=jnp.float32) + params["b_head"]
    col = jnp.arange(FC_PAD)[None, :]
    relu_cols = (col >= ID_DIMS) & (col < ID_DIMS + EXP_DIMS)
    out = jnp.where(relu_cols, jnp.maximum(out, 0.0), out)
    return out[:, :FC_DIM]


if __name__ == "__main__":
    key = jax.random.PRNGKey(0)
    kx, kp = jax.random.split(key)

    B, C_IN, H, W = 2, 3, 16, 16                      # small RGB crops
    x = jax.random.normal(kx, (B, C_IN, H, W), jnp.float32)
    params = make_params(kp, C_IN)

    out = jax.block_until_ready(recon_net_forward(x, params, rgb_light=True))
    assert out.shape == (B, FC_DIM), out.shape

    ref = _reference(x, params)
    err = float(jnp.max(jnp.abs(out - ref)))
    assert jnp.allclose(out, ref, rtol=2e-2, atol=2e-2), err

    # rgb_light=False path: 227 (id/exp/tex/angle) + 9 (gamma mean) + 3 (trans) = FC_DIM - 18
    out2 = jax.block_until_ready(recon_net_forward(x, params, rgb_light=False))
    assert out2.shape == (B, FC_DIM - 18), out2.shape

    print("KERNEL_OK")
</pallas_src>

<mosaic_0001>
module attributes {stable_mosaic.version = 11 : i64} {
  func.func @_fused_kernel(%arg0: memref<2x3x256xf32, #tpu.memory_space<vmem>>, %arg1: memref<64x8xbf16, #tpu.memory_space<vmem>>, %arg2: memref<64x384xbf16, #tpu.memory_space<vmem>>, %arg3: memref<1x384xf32, #tpu.memory_space<vmem>>, %arg4: memref<2x384xf32, #tpu.memory_space<vmem>>, %arg5: memref<8x256xf32, #tpu.memory_space<vmem>>, %arg6: memref<2x64xf32, #tpu.memory_space<vmem>>) attributes {dimension_semantics = [], scalar_prefetch = 0 : i64, scratch_operands = 2 : i64, tpu.core_type = #tpu.core_type<tc>} {
    %0 = tpu.iota {dimensions = array<i32: 0>} : vector<8x256xi32>
    %c3_i32 = arith.constant 3 : i32
    %1 = vector.broadcast %c3_i32 : i32 to vector<8x256xi32>
    %2 = arith.cmpi eq, %0, %1 : vector<8x256xi32>
    %cst = arith.constant 1.000000e+00 : f32
    %cst_0 = arith.constant 0.000000e+00 : f32
    %3 = vector.broadcast %cst : f32 to vector<8x256xf32>
    %4 = vector.broadcast %cst_0 : f32 to vector<8x256xf32>
    %5 = arith.select %2, %3, %4 : vector<8x256xi1>, vector<8x256xf32>
    %c0 = arith.constant 0 : index
    %c0_1 = arith.constant 0 : index
    %6 = vector.load %arg5[%c0, %c0_1] : memref<8x256xf32, #tpu.memory_space<vmem>>, vector<8x256xf32>
    tpu.vector_store %arg5[%c0, %c0_1], %5 {strides = array<i32>} : memref<8x256xf32, #tpu.memory_space<vmem>>, vector<8x256xf32>,
    %cst_2 = arith.constant 3.906250e-03 : f32
    %7 = vector.broadcast %cst_2 : f32 to vector<1x256xf32>
    %c0_3 = arith.constant 0 : index
    %c0_4 = arith.constant 0 : index
    %c0_5 = arith.constant 0 : index
    %8 = vector.load %arg0[%c0_3, %c0_4, %c0_5] : memref<2x3x256xf32, #tpu.memory_space<vmem>>, vector<1x3x256xf32>
    %9 = vector.shape_cast %8 : vector<1x3x256xf32> to vector<3x256xf32>
    %c0_6 = arith.constant 0 : index
    %c0_7 = arith.constant 0 : index
    %10 = vector.load %arg5[%c0_6, %c0_7] : memref<8x256xf32, #tpu.memory_space<vmem>>, vector<3x256xf32>
    tpu.vector_store %arg5[%c0_6, %c0_7], %9 {strides = array<i32>} : memref<8x256xf32, #tpu.memory_space<vmem>>, vector<3x256xf32>,
    %c0_8 = arith.constant 0 : index
    %c0_9 = arith.constant 0 : index
    %11 = vector.load %arg5[%c0_8, %c0_9] : memref<8x256xf32, #tpu.memory_space<vmem>>, vector<8x256xf32>
    %12 = arith.truncf %11 : vector<8x256xf32> to vector<8x256xbf16>
    %c0_10 = arith.constant 0 : index
    %c0_11 = arith.constant 0 : index
    %13 = vector.load %arg1[%c0_10, %c0_11] : memref<64x8xbf16, #tpu.memory_space<vmem>>, vector<64x8xbf16>
    %cst_12 = arith.constant dense<0.000000e+00> : vector<64x256xf32>
    %14 = tpu.matmul %13, %12, %cst_12 {dimension_numbers = #tpu.dot_dimension_numbers<[1], [0], [0], [1], [0, 0, 1, 1], [], []>} : vector<64x8xbf16>, vector<8x256xbf16>, vector<64x256xf32> -> vector<64x256xf32>
    %cst_13 = arith.constant 0.000000e+00 : f32
    %15 = vector.broadcast %cst_13 : f32 to vector<64x256xf32>
    %16 = arith.maximumf %14, %15 : vector<64x256xf32>
    %cst_14 = arith.constant dense<0.000000e+00> : vector<1x64xf32>
    %17 = tpu.matmul %7, %16, %cst_14 {dimension_numbers = #tpu.dot_dimension_numbers<[1], [1], [0], [0], [0, 0, 1, 0], [], []>} : vector<1x256xf32>, vector<64x256xf32>, vector<1x64xf32> -> vector<1x64xf32>
    %c0_15 = arith.constant 0 : index
    %c0_16 = arith.constant 0 : index
    %18 = vector.load %arg6[%c0_15, %c0_16] : memref<2x64xf32, #tpu.memory_space<vmem>>, vector<1x64xf32>
    tpu.vector_store %arg6[%c0_15, %c0_16], %17 {strides = array<i32>} : memref<2x64xf32, #tpu.memory_space<vmem>>, vector<1x64xf32>,
    %c1 = arith.constant 1 : index
    %c0_17 = arith.constant 0 : index
    %c0_18 = arith.constant 0 : index
    %19 = vector.load %arg0[%c1, %c0_17, %c0_18] : memref<2x3x256xf32, #tpu.memory_space<vmem>>, vector<1x3x256xf32>
    %20 = vector.shape_cast %19 : vector<1x3x256xf32> to vector<3x256xf32>
    %c0_19 = arith.constant 0 : index
    %c0_20 = arith.constant 0 : index
    %21 = vector.load %arg5[%c0_19, %c0_20] : memref<8x256xf32, #tpu.memory_space<vmem>>, vector<3x256xf32>
    tpu.vector_store %arg5[%c0_19, %c0_20], %20 {strides = array<i32>} : memref<8x256xf32, #tpu.memory_space<vmem>>, vector<3x256xf32>,
    %c0_21 = arith.constant 0 : index
    %c0_22 = arith.constant 0 : index
    %22 = vector.load %arg5[%c0_21, %c0_22] : memref<8x256xf32, #tpu.memory_space<vmem>>, vector<8x256xf32>
    %23 = arith.truncf %22 : vector<8x256xf32> to vector<8x256xbf16>
    %c0_23 = arith.constant 0 : index
    %c0_24 = arith.constant 0 : index
    %24 = vector.load %arg1[%c0_23, %c0_24] : memref<64x8xbf16, #tpu.memory_space<vmem>>, vector<64x8xbf16>
    %cst_25 = arith.constant dense<0.000000e+00> : vector<64x256xf32>
    %25 = tpu.matmul %24, %23, %cst_25 {dimension_numbers = #tpu.dot_dimension_numbers<[1], [0], [0], [1], [0, 0, 1, 1], [], []>} : vector<64x8xbf16>, vector<8x256xbf16>, vector<64x256xf32> -> vector<64x256xf32>
    %cst_26 = arith.constant 0.000000e+00 : f32
    %26 = vector.broadcast %cst_26 : f32 to vector<64x256xf32>
    %27 = arith.maximumf %25, %26 : vector<64x256xf32>
    %cst_27 = arith.constant dense<0.000000e+00> : vector<1x64xf32>
    %28 = tpu.matmul %7, %27, %cst_27 {dimension_numbers = #tpu.dot_dimension_numbers<[1], [1], [0], [0], [0, 0, 1, 0], [], []>} : vector<1x256xf32>, vector<64x256xf32>, vector<1x64xf32> -> vector<1x64xf32>
    %c1_28 = arith.constant 1 : index
    %c0_29 = arith.constant 0 : index
    %29 = vector.load %arg6[%c1_28, %c0_29] : memref<2x64xf32, #tpu.memory_space<vmem>>, vector<1x64xf32>
    tpu.vector_store %arg6[%c1_28, %c0_29], %28 {strides = array<i32>} : memref<2x64xf32, #tpu.memory_space<vmem>>, vector<1x64xf32>,
    %c0_30 = arith.constant 0 : index
    %c0_31 = arith.constant 0 : index
    %30 = vector.load %arg6[%c0_30, %c0_31] : memref<2x64xf32, #tpu.memory_space<vmem>>, vector<2x64xf32>
    %31 = arith.truncf %30 : vector<2x64xf32> to vector<2x64xbf16>
    %c0_32 = arith.constant 0 : index
    %c0_33 = arith.constant 0 : index
    %32 = vector.load %arg2[%c0_32, %c0_33] : memref<64x384xbf16, #tpu.memory_space<vmem>>, vector<64x384xbf16>
    %cst_34 = arith.constant dense<0.000000e+00> : vector<2x384xf32>
    %33 = tpu.matmul %31, %32, %cst_34 {dimension_numbers = #tpu.dot_dimension_numbers<[1], [0], [0], [1], [0, 0, 1, 1], [], []>} : vector<2x64xbf16>, vector<64x384xbf16>, vector<2x384xf32> -> vector<2x384xf32>
    %c0_35 = arith.constant 0 : index
    %c0_36 = arith.constant 0 : index
    %34 = vector.load %arg3[%c0_35, %c0_36] : memref<1x384xf32, #tpu.memory_space<vmem>>, vector<1x384xf32>
    %35 = vector.broadcast %34 : vector<1x384xf32> to vector<2x384xf32>
    %36 = arith.addf %33, %35 : vector<2x384xf32>
    %37 = tpu.iota {dimensions = array<i32: 1>} : vector<1x384xi32>
    %c80_i32 = arith.constant 80 : i32
    %38 = vector.broadcast %c80_i32 : i32 to vector<1x384xi32>
    %39 = arith.cmpi sge, %37, %38 : vector<1x384xi32>
    %c144_i32 = arith.constant 144 : i32
    %40 = vector.broadcast %c144_i32 : i32 to vector<1x384xi32>
    %41 = arith.cmpi slt, %37, %40 : vector<1x384xi32>
    %42 = arith.andi %39, %41 : vector<1x384xi1>
    %cst_37 = arith.constant 0.000000e+00 : f32
    %43 = vector.broadcast %cst_37 : f32 to vector<2x384xf32>
    %44 = arith.maximumf %36, %43 : vector<2x384xf32>
    %45 = vector.shape_cast %42 : vector<1x384xi1> to vector<1x384xi1>
    %46 = vector.broadcast %45 : vector<1x384xi1> to vector<2x384xi1>
    %47 = arith.select %46, %44, %36 : vector<2x384xi1>, vector<2x384xf32>
    %c0_38 = arith.constant 0 : index
    %c0_39 = arith.constant 0 : index
    %48 = vector.load %arg4[%c0_38, %c0_39] : memref<2x384xf32, #tpu.memory_space<vmem>>, vector<2x384xf32>
    tpu.vector_store %arg4[%c0_38, %c0_39], %47 {strides = array<i32>} : memref<2x384xf32, #tpu.memory_space<vmem>>, vector<2x384xf32>,
    return
  }
}

</mosaic_0001>

<llo_original>
// kernel: tpu_custom_call.1
$region0: #{tpu_custom_call.1}
  #allocation0 [shape = 'u32[]', space=smem, size = 0x4, offset = 0x4, fixed_abs, tag = 'smem constant byte address 0x4 - core index']
  #allocation1 [shape = 'u32[144,128]{1,0:T(1,128)}', space=vmem, size = 0x12000, scoped, tag = 'internal scratch']
  #allocation2 [shape = 'f32[8,256]{1,0:T(8,128)}', space=vmem, size = 0x2000, scoped, tag = 'scratch operand']
  #allocation3 [shape = 'f32[2,64]{1,0:T(2,128)}', space=vmem, size = 0x400, scoped, tag = 'scratch operand']
  %s0 = inlined_call_operand.vmem [shape: f32[2,3,256], index: 0, kind: input, shape index: {}]
  %s1 = inlined_call_operand.vmem [shape: bf16[64,8], index: 1, kind: input, shape index: {}]
  %s2 = inlined_call_operand.hbm [shape: bf16[64,384], index: 2, kind: input, shape index: {}]
  %s3 = inlined_call_operand.vmem [shape: f32[1,384], index: 3, kind: input, shape index: {}]
  %s4 = inlined_call_operand.hbm [shape: f32[2,384], index: 4, kind: output, shape index: {}]
  %s5 = sld [smem:[#allocation0]]
  $region30: #{tpu_custom_call.1} parent=0
    _
  %s7 = ssub.s32 1, %s5
  %s8 = scalar_select 0, %s7, %s5
  $region1: #{tpu_custom_call.1} parent=0
    #allocation4 [shape = 'u8[49152]{0}', space=vmem, size = 0xc000, scoped, tag = 'input window, operand 2, single buffered']
    #allocation5 [shape = 's32[1]{0}', space=sflag, size = 0x4, scoped, tag = 'scoped memory for tpu_custom_call.1']
    #allocation6 [shape = 's32[1]{0}', space=sflag, size = 0x4, scoped, tag = 'scoped memory for tpu_custom_call.1']
    #allocation7 [shape = 'u8[3072]{0}', space=vmem, size = 0xc00, scoped, tag = 'output window, operand 0, single buffered']
    %9 = vsyncpa [#allocation5], 0
    %10 = vsyncpa [#allocation6], 0
    // Predicated region
    $region2: #{tpu_custom_call.1} parent=1 // pred_check
      _
    $region3: #{tpu_custom_call.1} parent=1 // pred_check_branch
      %12 = sbr.rel (0) target = $region5
    $region4: #{tpu_custom_call.1} parent=1 // pred_region
      _
    $region5: #{tpu_custom_call.1} parent=1 // pred_fallthru
      _
    // Predicated region
    $region6: #{tpu_custom_call.1} parent=1 // pred_check
      _
    $region7: #{tpu_custom_call.1} parent=1 // pred_check_branch
      %14 = sbr.rel (0) target = $region9
    $region8: #{tpu_custom_call.1} parent=1 // pred_region
      _
    $region9: #{tpu_custom_call.1} parent=1 // pred_fallthru
      _
    // Predicated region
    $region10: #{tpu_custom_call.1} parent=1 // pred_check
      _
    $region11: #{tpu_custom_call.1} parent=1 // pred_check_branch
      %16 = sbr.rel (0) target = $region13
    $region12: #{tpu_custom_call.1} parent=1 // pred_region
      %s18 = ssub.s32 1536, 1536
      %19 = vsyncadd [#allocation5], %s18
      %s20 = sshll.u32 [#allocation4], 4
      %s21 = int_to_ptr.vmem [resolvable:$true] %s20
      %26 = dma.hbm_to_vmem [thread:$0]  %s2, 1536, %s21, [#allocation5], 192, 192, 12
    $region13: #{tpu_custom_call.1} parent=1 // pred_fallthru
      _
    // Predicated region
    $region14: #{tpu_custom_call.1} parent=1 // pred_check
      _
    $region15: #{tpu_custom_call.1} parent=1 // pred_check_branch
      %28 = sbr.rel (0) target = $region17
    $region16: #{tpu_custom_call.1} parent=1 // pred_region
      _
    $region17: #{tpu_custom_call.1} parent=1 // pred_fallthru
      _
    // Predicated region
    $region18: #{tpu_custom_call.1} parent=1 // pred_check
      _
    $region19: #{tpu_custom_call.1} parent=1 // pred_check_branch
      %30 = sbr.rel (0) target = $region21
    $region20: #{tpu_custom_call.1} parent=1 // pred_region
      %31 = dma.done [#allocation5], 1536
    $region21: #{tpu_custom_call.1} parent=1 // pred_fallthru
      _
    %v33 = vlaneseq
    %v34 = vshrl.u32 %v33, 7
    %vm35 = vcmp.eq.s32.totalorder %v34, 3
    %v36 = vsel %vm35, 1.0, 0.0
    %37 = vst [vmem:[#allocation2] sm:$0xff] %v36
    %38 = vst [vmem:[#allocation2 + $0x8] sm:$0xff] %v36
    %v39 = vld [vmem:[%s0] sm:$0x77]
    %v41 = vcombine.high %v39, %v39
    %43 = vst [vmem:[#allocation2] sm:$0x7] %v39
    %44 = vst [vmem:[#allocation2 + $0x8] sm:$0x7] %v41
    %v45 = vld [vmem:[#allocation2] sm:$0xff]
    %v46 = vld [vmem:[#allocation2 + $0x8] sm:$0xff]
    %v47 = vpack.c.bf16 %v45, %v45
    %v48 = vpack.c.bf16 %v46, %v46
    %v49 = vld [vmem:[%s1] sm:$0xf]
    %v50 = vld [vmem:[%s1 + $0x4] sm:$0xf]
    %v51 = vld [vmem:[%s1 + $0x8] sm:$0xf]
    %v52 = vld [vmem:[%s1 + $0xc] sm:$0xf]
    %v53 = vld [vmem:[%s1 + $0x10] sm:$0xf]
    %v54 = vld [vmem:[%s1 + $0x14] sm:$0xf]
    %v55 = vld [vmem:[%s1 + $0x18] sm:$0xf]
    %v56 = vld [vmem:[%s1 + $0x1c] sm:$0xf]
    %v65 = vunpack.c.l.b16 %v49
    %v66 = vunpack.c.l.b16 %v50
    %v67 = vunpack.c.l.b16 %v51
    %v68 = vunpack.c.l.b16 %v52
    %v69 = vunpack.c.l.b16 %v53
    %v70 = vunpack.c.l.b16 %v54
    %v71 = vunpack.c.l.b16 %v55
    %v72 = vunpack.c.l.b16 %v56
    %v73 = vpack.c.b16 %v66, %v65
    %v74 = vpack.c.b16 %v68, %v67
    %v75 = vpack.c.b16 %v70, %v69
    %v76 = vpack.c.b16 %v72, %v71
    %vm77 = vcmask 64512
    %v79 = vsel %vm77, %v73, 0
    %v82 = vsel %vm77, %v74, 0
    %v85 = vsel %vm77, %v75, 0
    %v88 = vsel %vm77, %v76, 0
    %vm90 = vcmask 1043456
    %v92 = vsel %vm90, %v47, 0
    %v95 = vsel %vm90, %v48, 0
    %97 = vmatprep.subr.bf16.mxu0 %v95
    %98 = vmatpush1.bf16.msra.mxu0 %v92
    %99 = vmatprep.subr.bf16.mxu0 0
    %100 = vmatpush1.bf16.msra.mxu0 0
    %101 = vmatprep.subr.bf16.mxu0 0
    %102 = vmatpush1.bf16.msra.mxu0 0
    %103 = vmatprep.subr.bf16.mxu0 0
    %104 = vmatpush1.bf16.msra.mxu0 0
    %105 = vmatprep.subr.bf16.mxu0 0
    %106 = vmatpush1.bf16.msra.mxu0 0
    %107 = vmatprep.subr.bf16.mxu0 0
    %108 = vmatpush1.bf16.msra.mxu0 0
    %109 = vmatprep.subr.bf16.mxu0 0
    %110 = vmatpush1.bf16.msra.mxu0 0
    %111 = vmatprep.subr.bf16.mxu0 0
    %112 = vmatpush1.bf16.msra.mxu0 0
    %113 = vmatprep.subr.bf16.mxu0 0
    %114 = vmatpush1.bf16.msra.mxu0 0
    %115 = vmatprep.subr.bf16.mxu0 0
    %116 = vmatpush1.bf16.msra.mxu0 0
    %117 = vmatprep.subr.bf16.mxu0 0
    %118 = vmatpush1.bf16.msra.mxu0 0
    %119 = vmatprep.subr.bf16.mxu0 0
    %120 = vmatpush1.bf16.msra.mxu0 0
    %121 = vmatprep.subr.bf16.mxu0 0
    %122 = vmatpush1.bf16.msra.mxu0 0
    %123 = vmatprep.subr.bf16.mxu0 0
    %124 = vmatpush1.bf16.msra.mxu0 0
    %125 = vmatprep.subr.bf16.mxu0 0
    %126 = vmatpush1.bf16.msra.mxu0 0
    %127 = vmatprep.subr.bf16.mxu0 0
    %128 = vmatpush1.bf16.msra.mxu0 0
    %129 = vmatprep.mubr.bf16.mxu0 0
    %130 = vmatmul.mubr.bf16.gmra.mrb[0].mxu0 %v79
    %v131 = vpop.f32.mrb[0].mxu0
    %v132 = vadd.f32 0.0, %v131
    %v133 = vpop.f32.mrb[0].mxu0
    %v134 = vadd.f32 0.0, %v133
    %v135 = vpop.f32.mrb[0].mxu0
    %v136 = vadd.f32 0.0, %v135
    %v137 = vpop.f32.mrb[0].mxu0
    %v138 = vadd.f32 0.0, %v137
    %139 = vmatprep.mubr.bf16.mxu0 0
    %140 = vmatmul.mubr.bf16.gmra.mrb[0].mxu0 %v82
    %v141 = vpop.f32.mrb[0].mxu0
    %v142 = vadd.f32 0.0, %v141
    %v143 = vpop.f32.mrb[0].mxu0
    %v144 = vadd.f32 0.0, %v143
    %v145 = vpop.f32.mrb[0].mxu0
    %v146 = vadd.f32 0.0, %v145
    %v147 = vpop.f32.mrb[0].mxu0
    %v148 = vadd.f32 0.0, %v147
    %149 = vmatprep.mubr.bf16.mxu0 0
    %150 = vmatmul.mubr.bf16.gmra.mrb[0].mxu0 %v85
    %v151 = vpop.f32.mrb[0].mxu0
    %v152 = vadd.f32 0.0, %v151
    %v153 = vpop.f32.mrb[0].mxu0
    %v154 = vadd.f32 0.0, %v153
    %v155 = vpop.f32.mrb[0].mxu0
    %v156 = vadd.f32 0.0, %v155
    %v157 = vpop.f32.mrb[0].mxu0
    %v158 = vadd.f32 0.0, %v157
    %159 = vmatprep.mubr.bf16.mxu0 0
    %160 = vmatmul.mubr.bf16.gmra.mrb[0].mxu0 %v88
    %v161 = vpop.f32.mrb[0].mxu0
    %v162 = vadd.f32 0.0, %v161
    %v163 = vpop.f32.mrb[0].mxu0
    %v164 = vadd.f32 0.0, %v163
    %v165 = vpop.f32.mrb[0].mxu0
    %v166 = vadd.f32 0.0, %v165
    %v167 = vpop.f32.mrb[0].mxu0
    %v168 = vadd.f32 0.0, %v167
    %169 = vdwg.mxu0
    %v170 = vmax.f32 %v132, 0.0
    %v171 = vmax.f32 %v134, 0.0
    %v172 = vmax.f32 %v136, 0.0
    %v173 = vmax.f32 %v138, 0.0
    %v174 = vmax.f32 %v142, 0.0
    %v175 = vmax.f32 %v144, 0.0
    %v176 = vmax.f32 %v146, 0.0
    %v177 = vmax.f32 %v148, 0.0
    %v178 = vmax.f32 %v152, 0.0
    %v179 = vmax.f32 %v154, 0.0
    %v180 = vmax.f32 %v156, 0.0
    %v181 = vmax.f32 %v158, 0.0
    %v182 = vmax.f32 %v162, 0.0
    %v183 = vmax.f32 %v164, 0.0
    %v184 = vmax.f32 %v166, 0.0
    %v185 = vmax.f32 %v168, 0.0
    %186 = vmatprep.subr.mxu0 %v171
    %187 = vmatpush1.xpose.msra.mxu0 %v170
    %188 = vmatprep.subr.mxu0 %v173
    %189 = vmatpush1.xpose.msra.mxu0 %v172
    %190 = vmatprep.subr.mxu0 %v175
    %191 = vmatpush1.xpose.msra.mxu0 %v174
    %192 = vmatprep.subr.mxu0 %v177
    %193 = vmatpush1.xpose.msra.mxu0 %v176
    %194 = vmatprep.subr.mxu0 %v179
    %195 = vmatpush1.xpose.msra.mxu0 %v178
    %196 = vmatprep.subr.mxu0 %v181
    %197 = vmatpush1.xpose.msra.mxu0 %v180
    %198 = vmatprep.subr.mxu0 %v183
    %199 = vmatpush1.xpose.msra.mxu0 %v182
    %200 = vmatprep.subr.mxu0 %v185
    %201 = vmatpush1.xpose.msra.mxu0 %v184
    %202 = vmatprep.subr.mxu0 0.0
    %203 = vmatpush1.xpose.msra.mxu0 0.0
    %204 = vmatprep.subr.mxu0 0.0
    %205 = vmatpush1.xpose.msra.mxu0 0.0
    %206 = vmatprep.subr.mxu0 0.0
    %207 = vmatpush1.xpose.msra.mxu0 0.0
    %208 = vmatprep.subr.mxu0 0.0
    %209 = vmatpush1.xpose.msra.mxu0 0.0
    %210 = vmatprep.subr.mxu0 0.0
    %211 = vmatpush1.xpose.msra.mxu0 0.0
    %212 = vmatprep.subr.mxu0 0.0
    %213 = vmatpush1.xpose.msra.mxu0 0.0
    %214 = vmatprep.subr.mxu0 0.0
    %215 = vmatpush1.xpose.msra.mxu0 0.0
    %216 = vmatprep.subr.mxu0 0.0
    %217 = vmatpush1.xpose.msra.mxu0 0.0
    %218 = vmatprep.subr.mxu0 0.0
    %219 = vmatpush1.xpose.msra.mxu0 0.0
    %220 = vmatprep.subr.mxu0 0.0
    %221 = vmatpush1.xpose.msra.mxu0 0.0
    %222 = vmatprep.subr.mxu0 0.0
    %223 = vmatpush1.xpose.msra.mxu0 0.0
    %224 = vmatprep.subr.mxu0 0.0
    %225 = vmatpush1.xpose.msra.mxu0 0.0
    %226 = vmatprep.subr.mxu0 0.0
    %227 = vmatpush1.xpose.msra.mxu0 0.0
    %228 = vmatprep.subr.mxu0 0.0
    %229 = vmatpush1.xpose.msra.mxu0 0.0
    %230 = vmatprep.subr.mxu0 0.0
    %231 = vmatpush1.xpose.msra.mxu0 0.0
    %232 = vmatprep.subr.mxu0 0.0
    %233 = vmatpush1.xpose.msra.mxu0 0.0
    %234 = vmatprep.subr.mxu0 0.0
    %235 = vmatpush1.xpose.msra.mxu0 0.0
    %236 = vmatprep.subr.mxu0 0.0
    %237 = vmatpush1.xpose.msra.mxu0 0.0
    %238 = vmatprep.subr.mxu0 0.0
    %239 = vmatpush1.xpose.msra.mxu0 0.0
    %240 = vmatprep.subr.mxu0 0.0
    %241 = vmatpush1.xpose.msra.mxu0 0.0
    %242 = vmatprep.subr.mxu0 0.0
    %243 = vmatpush1.xpose.msra.mxu0 0.0
    %244 = vmatprep.subr.mxu0 0.0
    %245 = vmatpush1.xpose.msra.mxu0 0.0
    %246 = vmatprep.subr.mxu0 0.0
    %247 = vmatpush1.xpose.msra.mxu0 0.0
    %248 = vmatprep.subr.mxu0 0.0
    %249 = vmatpush1.xpose.msra.mxu0 0.0
    %250 = vmatprep.mubr.f32.mxu0 0.00390625
    %251 = vmatmul.mubr.f32.gmra.mrb[0].mxu0 0.00390625
    %v252 = vpop.f32.mrb[0].mxu0
    %v253 = vadd.f32 0.0, %v252
    %v254 = vpop.f32.mrb[0].mxu0
    %255 = vdwg.mxu0
    %vm256 = vcmask 516096
    %257 = vst.msk [vmem:[#allocation3] sm:$0x1] %vm256, %v253
    %s258 = scalar_lea.vmem %s0, 8
    %v259 = vld [vmem:[%s258] sm:$0x77]
    %v261 = vcombine.high %v259, %v259
    %263 = vst [vmem:[#allocation2] sm:$0x7] %v259
    %264 = vst [vmem:[#allocation2 + $0x8] sm:$0x7] %v261
    %v265 = vld [vmem:[#allocation2] sm:$0xff]
    %v266 = vld [vmem:[#allocation2 + $0x8] sm:$0xff]
    %v267 = vpack.c.bf16 %v265, %v265
    %v268 = vpack.c.bf16 %v266, %v266
    %v269 = vld [vmem:[%s1] sm:$0xf]
    %v270 = vld [vmem:[%s1 + $0x4] sm:$0xf]
    %v271 = vld [vmem:[%s1 + $0x8] sm:$0xf]
    %v272 = vld [vmem:[%s1 + $0xc] sm:$0xf]
    %v273 = vld [vmem:[%s1 + $0x10] sm:$0xf]
    %v274 = vld [vmem:[%s1 + $0x14] sm:$0xf]
    %v275 = vld [vmem:[%s1 + $0x18] sm:$0xf]
    %v276 = vld [vmem:[%s1 + $0x1c] sm:$0xf]
    %v285 = vunpack.c.l.b16 %v269
    %v286 = vunpack.c.l.b16 %v270
    %v287 = vunpack.c.l.b16 %v271
    %v288 = vunpack.c.l.b16 %v272
    %v289 = vunpack.c.l.b16 %v273
    %v290 = vunpack.c.l.b16 %v274
    %v291 = vunpack.c.l.b16 %v275
    %v292 = vunpack.c.l.b16 %v276
    %v293 = vpack.c.b16 %v286, %v285
    %v294 = vpack.c.b16 %v288, %v287
    %v295 = vpack.c.b16 %v290, %v289
    %v296 = vpack.c.b16 %v292, %v291
    %v298 = vsel %vm77, %v293, 0
    %v301 = vsel %vm77, %v294, 0
    %v304 = vsel %vm77, %v295, 0
    %v307 = vsel %vm77, %v296, 0
    %v310 = vsel %vm90, %v267, 0
    %v313 = vsel %vm90, %v268, 0
    %315 = vmatprep.subr.bf16.mxu0 %v313
    %316 = vmatpush1.bf16.msra.mxu0 %v310
    %317 = vmatprep.subr.bf16.mxu0 0
    %318 = vmatpush1.bf16.msra.mxu0 0
    %319 = vmatprep.subr.bf16.mxu0 0
    %320 = vmatpush1.bf16.msra.mxu0 0
    %321 = vmatprep.subr.bf16.mxu0 0
    %322 = vmatpush1.bf16.msra.mxu0 0
    %323 = vmatprep.subr.bf16.mxu0 0
    %324 = vmatpush1.bf16.msra.mxu0 0
    %325 = vmatprep.subr.bf16.mxu0 0
    %326 = vmatpush1.bf16.msra.mxu0 0
    %327 = vmatprep.subr.bf16.mxu0 0
    %328 = vmatpush1.bf16.msra.mxu0 0
    %329 = vmatprep.subr.bf16.mxu0 0
    %330 = vmatpush1.bf16.msra.mxu0 0
    %331 = vmatprep.subr.bf16.mxu0 0
    %332 = vmatpush1.bf16.msra.mxu0 0
    %333 = vmatprep.subr.bf16.mxu0 0
    %334 = vmatpush1.bf16.msra.mxu0 0
    %335 = vmatprep.subr.bf16.mxu0 0
    %336 = vmatpush1.bf16.msra.mxu0 0
    %337 = vmatprep.subr.bf16.mxu0 0
    %338 = vmatpush1.bf16.msra.mxu0 0
    %339 = vmatprep.subr.bf16.mxu0 0
    %340 = vmatpush1.bf16.msra.mxu0 0
    %341 = vmatprep.subr.bf16.mxu0 0
    %342 = vmatpush1.bf16.msra.mxu0 0
    %343 = vmatprep.subr.bf16.mxu0 0
    %344 = vmatpush1.bf16.msra.mxu0 0
    %345 = vmatprep.subr.bf16.mxu0 0
    %346 = vmatpush1.bf16.msra.mxu0 0
    %347 = vmatprep.mubr.bf16.mxu0 0
    %348 = vmatmul.mubr.bf16.gmra.mrb[0].mxu0 %v298
    %v349 = vpop.f32.mrb[0].mxu0
    %v350 = vadd.f32 0.0, %v349
    %v351 = vpop.f32.mrb[0].mxu0
    %v352 = vadd.f32 0.0, %v351
    %v353 = vpop.f32.mrb[0].mxu0
    %v354 = vadd.f32 0.0, %v353
    %v355 = vpop.f32.mrb[0].mxu0
    %v356 = vadd.f32 0.0, %v355
    %357 = vmatprep.mubr.bf16.mxu0 0
    %358 = vmatmul.mubr.bf16.gmra.mrb[0].mxu0 %v301
    %v359 = vpop.f32.mrb[0].mxu0
    %v360 = vadd.f32 0.0, %v359
    %v361 = vpop.f32.mrb[0].mxu0
    %v362 = vadd.f32 0.0, %v361
    %v363 = vpop.f32.mrb[0].mxu0
    %v364 = vadd.f32 0.0, %v363
    %v365 = vpop.f32.mrb[0].mxu0
    %v366 = vadd.f32 0.0, %v365
    %367 = vmatprep.mubr.bf16.mxu0 0
    %368 = vmatmul.mubr.bf16.gmra.mrb[0].mxu0 %v304
    %v369 = vpop.f32.mrb[0].mxu0
    %v370 = vadd.f32 0.0, %v369
    %v371 = vpop.f32.mrb[0].mxu0
    %v372 = vadd.f32 0.0, %v371
    %v373 = vpop.f32.mrb[0].mxu0
    %v374 = vadd.f32 0.0, %v373
    %v375 = vpop.f32.mrb[0].mxu0
    %v376 = vadd.f32 0.0, %v375
    %377 = vmatprep.mubr.bf16.mxu0 0
    %378 = vmatmul.mubr.bf16.gmra.mrb[0].mxu0 %v307
    %v379 = vpop.f32.mrb[0].mxu0
    %v380 = vadd.f32 0.0, %v379
    %v381 = vpop.f32.mrb[0].mxu0
    %v382 = vadd.f32 0.0, %v381
    %v383 = vpop.f32.mrb[0].mxu0
    %v384 = vadd.f32 0.0, %v383
    %v385 = vpop.f32.mrb[0].mxu0
    %v386 = vadd.f32 0.0, %v385
    %387 = vdwg.mxu0
    %v388 = vmax.f32 %v350, 0.0
    %v389 = vmax.f32 %v352, 0.0
    %v390 = vmax.f32 %v354, 0.0
    %v391 = vmax.f32 %v356, 0.0
    %v392 = vmax.f32 %v360, 0.0
    %v393 = vmax.f32 %v362, 0.0
    %v394 = vmax.f32 %v364, 0.0
    %v395 = vmax.f32 %v366, 0.0
    %v396 = vmax.f32 %v370, 0.0
    %v397 = vmax.f32 %v372, 0.0
    %v398 = vmax.f32 %v374, 0.0
    %v399 = vmax.f32 %v376, 0.0
    %v400 = vmax.f32 %v380, 0.0
    %v401 = vmax.f32 %v382, 0.0
    %v402 = vmax.f32 %v384, 0.0
    %v403 = vmax.f32 %v386, 0.0
    %404 = vmatprep.subr.mxu0 %v389
    %405 = vmatpush1.xpose.msra.mxu0 %v388
    %406 = vmatprep.subr.mxu0 %v391
    %407 = vmatpush1.xpose.msra.mxu0 %v390
    %408 = vmatprep.subr.mxu0 %v393
    %409 = vmatpush1.xpose.msra.mxu0 %v392
    %410 = vmatprep.subr.mxu0 %v395
    %411 = vmatpush1.xpose.msra.mxu0 %v394
    %412 = vmatprep.subr.mxu0 %v397
    %413 = vmatpush1.xpose.msra.mxu0 %v396
    %414 = vmatprep.subr.mxu0 %v399
    %415 = vmatpush1.xpose.msra.mxu0 %v398
    %416 = vmatprep.subr.mxu0 %v401
    %417 = vmatpush1.xpose.msra.mxu0 %v400
    %418 = vmatprep.subr.mxu0 %v403
    %419 = vmatpush1.xpose.msra.mxu0 %v402
    %420 = vmatprep.subr.mxu0 0.0
    %421 = vmatpush1.xpose.msra.mxu0 0.0
    %422 = vmatprep.subr.mxu0 0.0
    %423 = vmatpush1.xpose.msra.mxu0 0.0
    %424 = vmatprep.subr.mxu0 0.0
    %425 = vmatpush1.xpose.msra.mxu0 0.0
    %426 = vmatprep.subr.mxu0 0.0
    %427 = vmatpush1.xpose.msra.mxu0 0.0
    %428 = vmatprep.subr.mxu0 0.0
    %429 = vmatpush1.xpose.msra.mxu0 0.0
    %430 = vmatprep.subr.mxu0 0.0
    %431 = vmatpush1.xpose.msra.mxu0 0.0
    %432 = vmatprep.subr.mxu0 0.0
    %433 = vmatpush1.xpose.msra.mxu0 0.0
    %434 = vmatprep.subr.mxu0 0.0
    %435 = vmatpush1.xpose.msra.mxu0 0.0
    %436 = vmatprep.subr.mxu0 0.0
    %437 = vmatpush1.xpose.msra.mxu0 0.0
    %438 = vmatprep.subr.mxu0 0.0
    %439 = vmatpush1.xpose.msra.mxu0 0.0
    %440 = vmatprep.subr.mxu0 0.0
    %441 = vmatpush1.xpose.msra.mxu0 0.0
    %442 = vmatprep.subr.mxu0 0.0
    %443 = vmatpush1.xpose.msra.mxu0 0.0
    %444 = vmatprep.subr.mxu0 0.0
    %445 = vmatpush1.xpose.msra.mxu0 0.0
    %446 = vmatprep.subr.mxu0 0.0
    %447 = vmatpush1.xpose.msra.mxu0 0.0
    %448 = vmatprep.subr.mxu0 0.0
    %449 = vmatpush1.xpose.msra.mxu0 0.0
    %450 = vmatprep.subr.mxu0 0.0
    %451 = vmatpush1.xpose.msra.mxu0 0.0
    %452 = vmatprep.subr.mxu0 0.0
    %453 = vmatpush1.xpose.msra.mxu0 0.0
    %454 = vmatprep.subr.mxu0 0.0
    %455 = vmatpush1.xpose.msra.mxu0 0.0
    %456 = vmatprep.subr.mxu0 0.0
    %457 = vmatpush1.xpose.msra.mxu0 0.0
    %458 = vmatprep.subr.mxu0 0.0
    %459 = vmatpush1.xpose.msra.mxu0 0.0
    %460 = vmatprep.subr.mxu0 0.0
    %461 = vmatpush1.xpose.msra.mxu0 0.0
    %462 = vmatprep.subr.mxu0 0.0
    %463 = vmatpush1.xpose.msra.mxu0 0.0
    %464 = vmatprep.subr.mxu0 0.0
    %465 = vmatpush1.xpose.msra.mxu0 0.0
    %466 = vmatprep.subr.mxu0 0.0
    %467 = vmatpush1.xpose.msra.mxu0 0.0
    %468 = vmatprep.mubr.f32.mxu0 0.00390625
    %469 = vmatmul.mubr.f32.gmra.mrb[0].mxu0 0.00390625
    %v470 = vpop.f32.mrb[0].mxu0
    %v471 = vadd.f32 0.0, %v470
    %v472 = vpop.f32.mrb[0].mxu0
    %473 = vdwg.mxu0
    %474 = vst.msk [vmem:[#allocation3 + $0x1] sm:$0x1] %vm256, %v471
    %v475 = vld [vmem:[#allocation3] sm:$0x3]
    %v476 = vpack.c.bf16 %v475, %v475
    %v477 = vld [vmem:[#allocation4] sm:$0xff]
    %v478 = vld [vmem:[#allocation4 + $0x8] sm:$0xf]
    %v479 = vld [vmem:[#allocation4 + $0xc] sm:$0xff]
    %v480 = vld [vmem:[#allocation4 + $0x14] sm:$0xf]
    %v481 = vld [vmem:[#allocation4 + $0x18] sm:$0xff]
    %v482 = vld [vmem:[#allocation4 + $0x20] sm:$0xf]
    %v483 = vld [vmem:[#allocation4 + $0x24] sm:$0xff]
    %v484 = vld [vmem:[#allocation4 + $0x2c] sm:$0xf]
    %v485 = vld [vmem:[#allocation4 + $0x30] sm:$0xff]
    %v486 = vld [vmem:[#allocation4 + $0x38] sm:$0xf]
    %v487 = vld [vmem:[#allocation4 + $0x3c] sm:$0xff]
    %v488 = vld [vmem:[#allocation4 + $0x44] sm:$0xf]
    %v489 = vld [vmem:[#allocation4 + $0x48] sm:$0xff]
    %v490 = vld [vmem:[#allocation4 + $0x50] sm:$0xf]
    %v491 = vld [vmem:[#allocation4 + $0x54] sm:$0xff]
    %v492 = vld [vmem:[#allocation4 + $0x5c] sm:$0xf]
    %v493 = vld [vmem:[%s3] sm:$0x7]
    %v495 = vlaneseq
    %v496 = vshrl.u32 %v495, 7
    %v497 = vsub.s32 0, %v496
    %v498 = vrot.slane %v493, %v497
    %v499 = vlaneseq
    %v500 = vshrl.u32 %v499, 7
    %v501 = vsub.s32 1, %v500
    %v502 = vrot.slane %v493, %v501
    %v503 = vlaneseq
    %v504 = vshrl.u32 %v503, 7
    %v505 = vsub.s32 2, %v504
    %v506 = vrot.slane %v493, %v505
    %v526 = vunpack.c.l.b16 %v477
    %v527 = vunpack.c.h.b16 %v477
    %v528 = vunpack.c.l.b16 %v478
    %v529 = vunpack.c.l.b16 %v479
    %v530 = vunpack.c.h.b16 %v479
    %v531 = vunpack.c.l.b16 %v480
    %v532 = vunpack.c.l.b16 %v481
    %v533 = vunpack.c.h.b16 %v481
    %v534 = vunpack.c.l.b16 %v482
    %v535 = vunpack.c.l.b16 %v483
    %v536 = vunpack.c.h.b16 %v483
    %v537 = vunpack.c.l.b16 %v484
    %v538 = vunpack.c.l.b16 %v485
    %v539 = vunpack.c.h.b16 %v485
    %v540 = vunpack.c.l.b16 %v486
    %v541 = vunpack.c.l.b16 %v487
    %v542 = vunpack.c.h.b16 %v487
    %v543 = vunpack.c.l.b16 %v488
    %v544 = vunpack.c.l.b16 %v489
    %v545 = vunpack.c.h.b16 %v489
    %v546 = vunpack.c.l.b16 %v490
    %v547 = vunpack.c.l.b16 %v491
    %v548 = vunpack.c.h.b16 %v491
    %v549 = vunpack.c.l.b16 %v492
    %v550 = vpack.c.b16 %v529, %v526
    %v551 = vpack.c.b16 %v530, %v527
    %v552 = vpack.c.b16 %v531, %v528
    %v553 = vpack.c.b16 %v535, %v532
    %v554 = vpack.c.b16 %v536, %v533
    %v555 = vpack.c.b16 %v537, %v534
    %v556 = vpack.c.b16 %v541, %v538
    %v557 = vpack.c.b16 %v542, %v539
    %v558 = vpack.c.b16 %v543, %v540
    %v559 = vpack.c.b16 %v547, %v544
    %v560 = vpack.c.b16 %v548, %v545
    %v561 = vpack.c.b16 %v549, %v546
    %vm574 = vcmask 523264
    %v576 = vsel %vm574, %v476, 0
    %578 = vmatprep.subr.bf16.mxu0 %v551
    %579 = vmatpush1.bf16.msra.mxu0 %v550
    %580 = vmatprep.subr.bf16.mxu0 %v554
    %581 = vmatpush1.bf16.msra.mxu0 %v553
    %582 = vmatprep.subr.bf16.mxu0 %v557
    %583 = vmatpush1.bf16.msra.mxu0 %v556
    %584 = vmatprep.subr.bf16.mxu0 %v560
    %585 = vmatpush1.bf16.msra.mxu0 %v559
    %586 = vmatprep.subr.bf16.mxu0 0
    %587 = vmatpush1.bf16.msra.mxu0 0
    %588 = vmatprep.subr.bf16.mxu0 0
    %589 = vmatpush1.bf16.msra.mxu0 0
    %590 = vmatprep.subr.bf16.mxu0 0
    %591 = vmatpush1.bf16.msra.mxu0 0
    %592 = vmatprep.subr.bf16.mxu0 0
    %593 = vmatpush1.bf16.msra.mxu0 0
    %594 = vmatprep.subr.bf16.mxu0 0
    %595 = vmatpush1.bf16.msra.mxu0 0
    %596 = vmatprep.subr.bf16.mxu0 0
    %597 = vmatpush1.bf16.msra.mxu0 0
    %598 = vmatprep.subr.bf16.mxu0 0
    %599 = vmatpush1.bf16.msra.mxu0 0
    %600 = vmatprep.subr.bf16.mxu0 0
    %601 = vmatpush1.bf16.msra.mxu0 0
    %602 = vmatprep.subr.bf16.mxu0 0
    %603 = vmatpush1.bf16.msra.mxu0 0
    %604 = vmatprep.subr.bf16.mxu0 0
    %605 = vmatpush1.bf16.msra.mxu0 0
    %606 = vmatprep.subr.bf16.mxu0 0
    %607 = vmatpush1.bf16.msra.mxu0 0
    %608 = vmatprep.subr.bf16.mxu0 0
    %609 = vmatpush1.bf16.msra.mxu0 0
    %610 = vmatprep.mubr.bf16.mxu0 0
    %611 = vmatmul.mubr.bf16.gmra.mrb[0].mxu0 %v576
    %v612 = vpop.f32.mrb[0].mxu0
    %v613 = vadd.f32 %v498, %v612
    %v614 = vpop.f32.mrb[0].mxu0
    %v615 = vadd.f32 %v502, %v614
    %v616 = vpop.f32.mrb[0].mxu0
    %v617 = vpop.f32.mrb[0].mxu0
    %618 = vdwg.mxu0
    %619 = vmatprep.subr.bf16.mxu0 0
    %620 = vmatpush1.bf16.msra.mxu0 %v552
    %621 = vmatprep.subr.bf16.mxu0 0
    %622 = vmatpush1.bf16.msra.mxu0 %v555
    %623 = vmatprep.subr.bf16.mxu0 0
    %624 = vmatpush1.bf16.msra.mxu0 %v558
    %625 = vmatprep.subr.bf16.mxu0 0
    %626 = vmatpush1.bf16.msra.mxu0 %v561
    %627 = vmatprep.subr.bf16.mxu0 0
    %628 = vmatpush1.bf16.msra.mxu0 0
    %629 = vmatprep.subr.bf16.mxu0 0
    %630 = vmatpush1.bf16.msra.mxu0 0
    %631 = vmatprep.subr.bf16.mxu0 0
    %632 = vmatpush1.bf16.msra.mxu0 0
    %633 = vmatprep.subr.bf16.mxu0 0
    %634 = vmatpush1.bf16.msra.mxu0 0
    %635 = vmatprep.subr.bf16.mxu0 0
    %636 = vmatpush1.bf16.msra.mxu0 0
    %637 = vmatprep.subr.bf16.mxu0 0
    %638 = vmatpush1.bf16.msra.mxu0 0
    %639 = vmatprep.subr.bf16.mxu0 0
    %640 = vmatpush1.bf16.msra.mxu0 0
    %641 = vmatprep.subr.bf16.mxu0 0
    %642 = vmatpush1.bf16.msra.mxu0 0
    %643 = vmatprep.subr.bf16.mxu0 0
    %644 = vmatpush1.bf16.msra.mxu0 0
    %645 = vmatprep.subr.bf16.mxu0 0
    %646 = vmatpush1.bf16.msra.mxu0 0
    %647 = vmatprep.subr.bf16.mxu0 0
    %648 = vmatpush1.bf16.msra.mxu0 0
    %649 = vmatprep.subr.bf16.mxu0 0
    %650 = vmatpush1.bf16.msra.mxu0 0
    %651 = vmatprep.mubr.bf16.mxu0 0
    %652 = vmatmul.mubr.bf16.gmra.mrb[0].mxu0 %v576
    %v653 = vpop.f32.mrb[0].mxu0
    %v654 = vadd.f32 %v506, %v653
    %v655 = vpop.f32.mrb[0].mxu0
    %v656 = vpop.f32.mrb[0].mxu0
    %v657 = vpop.f32.mrb[0].mxu0
    %658 = vdwg.mxu0
    %v659 = vlaneseq
    %v660 = vand.u32 %v659, 127
    %v661 = vadd.s32 %v660, 128
    %v662 = vadd.s32 %v660, 256
    %vm663 = vcmp.ge.s32.totalorder %v660, 80
    %vm664 = vcmp.ge.s32.totalorder %v661, 80
    %vm665 = vcmp.ge.s32.totalorder %v662, 80
    %vm666 = vcmp.lt.s32.totalorder %v660, 144
    %vm667 = vcmp.lt.s32.totalorder %v661, 144
    %vm668 = vcmp.lt.s32.totalorder %v662, 144
    %vm669 = vmand %vm663, %vm666
    %vm670 = vmand %vm664, %vm667
    %vm671 = vmand %vm665, %vm668
    %v672 = vmax.f32 %v613, 0.0
    %v673 = vmax.f32 %v615, 0.0
    %v674 = vmax.f32 %v654, 0.0
    %v675 = vsel %vm669, 1, 0
    %v676 = vsel %vm670, 1, 0
    %v677 = vsel %vm671, 1, 0
    %vm678 = vcmp.eq.s32.totalorder %v675, 1
    %vm679 = vcmp.eq.s32.totalorder %v676, 1
    %vm680 = vcmp.eq.s32.totalorder %v677, 1
    %v681 = vsel %vm678, %v672, %v613
    %v682 = vsel %vm679, %v673, %v615
    %v683 = vsel %vm680, %v674, %v654
    %v687 = vcombine.low %v681, %v682
    %v689 = vunpack.c.l.s4 1983009808
    %v690 = vunpack.c.0.s8 %v689
    %v691 = vlaneseq
    %v692 = vshrl.u32 %v691, 7
    %v693 = vsub.s32 %v690, %v692
    %v694 = vrot.slane %v687, %v693
    %v696 = vunpack.c.l.s4 1983009808
    %v697 = vunpack.c.0.s8 %v696
    %v698 = vlaneseq
    %v699 = vshrl.u32 %v698, 7
    %v700 = vsub.s32 %v697, %v699
    %v701 = vrot.slane %v683, %v700
    %v702 = vcombine.low %v694, %v701
    %704 = vst [vmem:[#allocation7] sm:$0x3f] %v702
    // Predicated region
    $region22: #{tpu_custom_call.1} parent=1 // pred_check
      _
    $region23: #{tpu_custom_call.1} parent=1 // pred_check_branch
      %706 = sbr.rel (0) target = $region25
    $region24: #{tpu_custom_call.1} parent=1 // pred_region
      %s708 = ssub.s32 96, 96
      %709 = vsyncadd [#allocation6], %s708
      %s711 = sshll.u32 [#allocation7], 4
      %s712 = int_to_ptr.vmem [resolvable:$true] %s711
      %714 = dma.vmem_to_hbm [thread:$0]  %s712, 96, %s4, [#allocation6]
    $region25: #{tpu_custom_call.1} parent=1 // pred_fallthru
      _
    // Predicated region
    $region26: #{tpu_custom_call.1} parent=1 // pred_check
      _
    $region27: #{tpu_custom_call.1} parent=1 // pred_check_branch
      %716 = sbr.rel (0) target = $region29
    $region28: #{tpu_custom_call.1} parent=1 // pred_region
      %717 = dma.done [#allocation6], 96
    $region29: #{tpu_custom_call.1} parent=1 // pred_fallthru
      _
    %718 = vsyncpa [#allocation5], 1
    %719 = vsyncpa [#allocation6], 1

</llo_original>
